<compile_context>
chip_gen: v7x
topology: tpu7x:2x2x1
jax: 0.10.0
libtpu: 0.0.40
codegen_flags: <defaults>
</compile_context>

<pallas_src>
import functools

import jax
import jax.numpy as jnp
from jax.experimental import pallas as pl
from jax.experimental.pallas import tpu as pltpu


def _cdiv(a, b):
    return -(-a // b)


def _vmem_capacity_bytes():
    try:
        return int(pltpu.get_tpu_info().vmem_capacity_bytes)
    except Exception:
        return 64 << 20  # conservative (v7x-sized) fallback, safe everywhere


def _choose_fold(num, d, min_itemsize):
    """Pick fold f (divisor of d) so rows = num*f fills sublanes, rows <= 32."""
    # Sublane-full row count for the narrowest streamed dtype:
    # f32 -> 8, bf16 -> 16, int8/bool -> 32.
    want = min(32, 8 * max(1, 4 // max(1, min_itemsize)))
    cands = [f for f in range(1, max(1, 32 // num) + 1) if d % f == 0]
    if not cands:
        return 1
    full = [f for f in cands if (num * f) % 8 == 0]
    if full:
        geq = [f for f in full if num * f >= want]
        return min(geq) if geq else max(full)
    # No sublane-full fold exists: take the largest rows <= 32 to avoid the
    # 2-4x vld/VALU inflation of nearly-empty sublanes.
    return max(cands)


def _accumulate_tile(x_ref, y_ref, out_ref, *, rows, valid_width, n_slots_cap):
    """Add lane-dense partials of (tanh(x/2)*t, tanh(x/2), t) into out_ref.

    Only the first `valid_width` lanes of the current (rows, tile_d) block are
    real data; trailing lanes of a partial last tile are masked out (both th
    and t, so garbage / NaN in padded lanes cannot propagate).
    """
    n_full = valid_width // 128
    rem = valid_width - n_full * 128
    # Independent accumulator "slots" break the serial VPU add chain while
    # keeping the register footprint ~constant as rows grows.
    n_slots = max(1, min(4, n_slots_cap, n_full if n_full > 0 else 1))

    zero = jnp.zeros((rows, 128), jnp.float32)
    accs = [zero] * (3 * n_slots)

    def chunk_update(a, lo, slot, mask_width=None):
        xj = x_ref[:, pl.ds(lo, 128)].astype(jnp.float32)
        tj = y_ref[:, pl.ds(lo, 128)].astype(jnp.float32)
        # sigmoid(x) = 0.5*tanh(x/2) + 0.5 (fixed up in the JAX glue).
        # If a v7x profile ever shows the EUP as the binding unit, compute the
        # tanh in bf16 (cast xj first) and keep accumulating in f32.
        th = jnp.tanh(0.5 * xj)
        if mask_width is not None:  # static: chunk straddles the true row end
            keep = jax.lax.broadcasted_iota(jnp.int32, (rows, 128), 1) < mask_width
            th = jnp.where(keep, th, 0.0)
            tj = jnp.where(keep, tj, 0.0)
        a = list(a)
        a[slot] = a[slot] + th * tj
        a[n_slots + slot] = a[n_slots + slot] + th
        a[2 * n_slots + slot] = a[2 * n_slots + slot] + tj
        return a

    n_groups = n_full // n_slots
    lead = n_full - n_groups * n_slots
    group_span = n_slots * 128

    if n_groups > 0:
        # fori_loop keeps instruction footprint bounded for huge tiles while
        # unroll=2 x n_slots chunks per body preserves scheduling visibility.
        def body(g, carry):
            a = list(carry)
            base = pl.multiple_of(g * group_span, 128)
            for s in range(n_slots):
                a = chunk_update(a, base + s * 128, s)
            return tuple(a)

        accs = list(jax.lax.fori_loop(0, n_groups, body, tuple(accs),
                                      unroll=min(2, n_groups)))

    for j in range(lead):  # leftover full 128-lane chunks (static)
        accs = chunk_update(accs, (n_groups * n_slots + j) * 128, j % n_slots)

    if rem > 0:  # masked partial chunk at the end of the valid data
        accs = chunk_update(accs, n_full * 128, 0, mask_width=rem)

    out_ref[0, :, 0:128] += functools.reduce(jnp.add, accs[0:n_slots])
    out_ref[0, :, 128:256] += functools.reduce(jnp.add, accs[n_slots:2 * n_slots])
    out_ref[0, :, 256:384] += functools.reduce(jnp.add, accs[2 * n_slots:3 * n_slots])


def _make_dice_kernel(rows, tile_d, tail_width, n_inner, nk, has_ghost,
                      n_slots_cap):
    def kernel(x_ref, y_ref, out_ref):
        c = pl.program_id(0)   # outer ("parallel") D chunk
        k = pl.program_id(1)   # inner reduction step

        @pl.when(k == 0)
        def _():
            out_ref[...] = jnp.zeros_like(out_ref)

        gidx = c * n_inner + k  # global tile index (>= nk on "ghost" steps)
        acc = functools.partial(_accumulate_tile, x_ref, y_ref, out_ref,
                                rows=rows, n_slots_cap=n_slots_cap)

        if tail_width == tile_d:          # D tiles evenly: single code path
            if has_ghost:
                @pl.when(gidx < nk)
                def _():
                    acc(valid_width=tile_d)
            else:
                acc(valid_width=tile_d)
        else:
            @pl.when(gidx < nk - 1)       # full tiles (ghost steps excluded)
            def _():
                acc(valid_width=tile_d)

            @pl.when(gidx == nk - 1)      # global last tile: masked tail
            def _():
                acc(valid_width=tail_width)

    return kernel


def soft_dice_loss(logits, targets, *, tile_d=None):
    num = logits.shape[0]
    x = logits.reshape(num, -1)
    y = targets.reshape(num, -1)
    d = x.shape[1]

    itemsizes = (x.dtype.itemsize, y.dtype.itemsize)
    fold = _choose_fold(num, d, min(itemsizes))
    rows = num * fold
    d_r = d // fold
    x = x.reshape(rows, d_r)
    y = y.reshape(rows, d_r)

    # Generation-aware tiling budget (per-step x-block + y-block bytes).
    vmem_cap = _vmem_capacity_bytes()
    if vmem_cap <= (64 << 20):        # v7x-class: 64 MiB VMEM, 3.2 TB/s HBM
        pair_budget = 12 << 20
        vmem_ceiling = 44 << 20
    else:                             # v5e / v6e: 128 MiB VMEM
        pair_budget = 24 << 20
        vmem_ceiling = 96 << 20

    d_r_pad = _cdiv(d_r, 128) * 128
    bytes_per_lane = rows * sum(itemsizes)
    if tile_d is None:
        tile_d = pair_budget // max(1, bytes_per_lane)
    tile_d = max(128, (int(tile_d) // 128) * 128)
    tile_d = min(tile_d, d_r_pad)

    nk = _cdiv(d_r, tile_d)
    # Split D into 2 "parallel" outer chunks when there is enough work so both
    # v7x TensorCores run (odd nk handled via clamped index_map + ghost step);
    # on single-TC v5e/v6e this is one harmless extra sequential iteration.
    n_outer = 2 if nk >= 8 else 1
    n_inner = _cdiv(nk, n_outer)
    has_ghost = n_outer * n_inner > nk
    tail_width = d_r - (nk - 1) * tile_d      # in [1, tile_d]

    # Keep accumulator register footprint ~constant as rows grows.
    n_slots_cap = max(1, 32 // max(8, rows))

    kernel = _make_dice_kernel(rows, tile_d, tail_width, n_inner, nk,
                               has_ghost, n_slots_cap)

    if has_ghost:
        def d_index(c, k):
            # Clamp the ghost step's block index; the kernel skips its math.
            return jnp.minimum(c * n_inner + k, nk - 1)
    else:
        def d_index(c, k):
            return c * n_inner + k

    in_spec = pl.BlockSpec((rows, tile_d), lambda c, k: (0, d_index(c, k)))
    # Output block is the accumulator: constant over the inner axis -> stays
    # resident in VMEM; one lane-dense HBM writeback per outer chunk.
    out_spec = pl.BlockSpec((1, rows, 384), lambda c, k: (c, 0, 0))

    pair_block_bytes = tile_d * bytes_per_lane
    vmem_limit = int(min(vmem_ceiling,
                         max(16 << 20, 2 * pair_block_bytes + (4 << 20))))

    partial = pl.pallas_call(
        kernel,
        out_shape=jax.ShapeDtypeStruct((n_outer, rows, 384), jnp.float32),
        grid_spec=pltpu.PrefetchScalarGridSpec(
            num_scalar_prefetch=0,
            grid=(n_outer, n_inner),
            in_specs=[in_spec, in_spec],
            out_specs=out_spec,
        ),
        compiler_params=pltpu.CompilerParams(
            dimension_semantics=("parallel", "arbitrary"),
            vmem_limit_bytes=vmem_limit,
        ),
    )(x, y)

    # ---- plain-JAX glue: tiny final reductions + scalar combination ----
    tht = partial[:, :, 0:128].sum(axis=(0, 2))    # sum(tanh(x/2) * t)  per row
    ths = partial[:, :, 128:256].sum(axis=(0, 2))  # sum(tanh(x/2))      per row
    ts = partial[:, :, 256:384].sum(axis=(0, 2))   # sum(t)              per row

    tht = tht.reshape(num, fold).sum(axis=1)
    ths = ths.reshape(num, fold).sum(axis=1)
    ts = ts.reshape(num, fold).sum(axis=1)

    # sigmoid(x) = 0.5*tanh(x/2) + 0.5
    inter = 0.5 * tht + 0.5 * ts       # sum(sigmoid(x) * t)
    m1 = 0.5 * ths + 0.5 * d           # sum(sigmoid(x))
    m2 = ts                            # sum(t)

    smooth = 1.0
    score = 2.0 * (inter + smooth) / (m1 + m2 + smooth)
    return 1.0 - jnp.sum(score) / num


def _reference(logits, targets):
    num = logits.shape[0]
    smooth = 1.0
    probs = jax.nn.sigmoid(logits)
    m1 = probs.reshape(num, -1)
    m2 = targets.reshape(num, -1)
    inter = (m1 * m2).sum(1)
    score = 2.0 * (inter + smooth) / (m1.sum(1) + m2.sum(1) + smooth)
    return 1.0 - score.sum() / num


if __name__ == "__main__":
    key = jax.random.PRNGKey(0)

    # Main check: the module's shape (batch=2, channels=4, 16x16 spatial).
    k1, k2 = jax.random.split(key)
    logits = jax.random.normal(k1, (2, 4, 16, 16), dtype=jnp.float32)
    targets = jax.random.bernoulli(k2, 0.5, (2, 4, 16, 16)).astype(jnp.float32)

    loss = jax.block_until_ready(soft_dice_loss(logits, targets))
    ref = _reference(logits, targets)
    assert jnp.allclose(loss, ref, atol=1e-5, rtol=1e-5), (loss, ref)

    # Multi-tile accumulation over the inner grid axis.
    loss2 = jax.block_until_ready(soft_dice_loss(logits, targets, tile_d=128))
    assert jnp.allclose(loss2, ref, atol=1e-5, rtol=1e-5), (loss2, ref)

    # Partial (masked) last tile: D = 3*10*10 = 300 is not 128-aligned.
    k3, k4 = jax.random.split(k2)
    lg3 = jax.random.normal(k3, (2, 3, 10, 10), dtype=jnp.float32)
    tg3 = jax.random.bernoulli(k4, 0.5, (2, 3, 10, 10)).astype(jnp.float32)
    loss3 = jax.block_until_ready(soft_dice_loss(lg3, tg3))
    assert jnp.allclose(loss3, _reference(lg3, tg3), atol=1e-5, rtol=1e-5)

    # Even nk (8 tiles): 2-way "parallel" outer split, no ghost step.
    k5, k6 = jax.random.split(k4)
    lg4 = jax.random.normal(k5, (2, 8, 64, 64), dtype=jnp.float32)
    tg4 = jax.random.bernoulli(k6, 0.5, (2, 8, 64, 64)).astype(jnp.float32)
    loss4 = jax.block_until_ready(soft_dice_loss(lg4, tg4, tile_d=1024))
    assert jnp.allclose(loss4, _reference(lg4, tg4), atol=1e-5, rtol=1e-5)

    # Odd nk (11 tiles): uneven 2-way split with a skipped ghost step plus a
    # masked partial tail tile and statically-peeled leftover chunks.
    k7, k8 = jax.random.split(k6)
    lg5 = jax.random.normal(k7, (2, 9, 64, 64), dtype=jnp.float32)
    tg5 = jax.random.bernoulli(k8, 0.5, (2, 9, 64, 64)).astype(jnp.float32)
    loss5 = jax.block_until_ready(soft_dice_loss(lg5, tg5, tile_d=896))
    assert jnp.allclose(loss5, _reference(lg5, tg5), atol=1e-5, rtol=1e-5)

    # Native bf16 inputs: streamed without any wrapper-side astype (HBM bytes
    # halved); kernel casts per chunk and accumulates in f32.
    lg6 = logits.astype(jnp.bfloat16)
    tg6 = targets.astype(jnp.bfloat16)
    loss6 = jax.block_until_ready(soft_dice_loss(lg6, tg6))
    ref6 = _reference(lg6.astype(jnp.float32), tg6.astype(jnp.float32))
    assert jnp.allclose(loss6, ref6, atol=1e-4, rtol=1e-4), (loss6, ref6)

    print("KERNEL_OK")
</pallas_src>

<mosaic_0001>
module attributes {stable_mosaic.version = 11 : i64} {
  func.func @kernel(%arg0: i32, %arg1: i32, %arg2: memref<8x256xf32, #tpu.memory_space<vmem>>, %arg3: memref<8x256xf32, #tpu.memory_space<vmem>>, %arg4: memref<1x8x384xf32, #tpu.memory_space<vmem>>) attributes {dimension_semantics = [#tpu.dimension_semantics<parallel>, #tpu.dimension_semantics<arbitrary>], iteration_bounds = array<i64: 1, 1>, scalar_prefetch = 0 : i64, scratch_operands = 0 : i64, tpu.core_type = #tpu.core_type<tc>, window_params = [{transform_indices = @transform_0, window_bounds = array<i64: 8, 256>}, {transform_indices = @transform_1, window_bounds = array<i64: 8, 256>}, {transform_indices = @transform_2, window_bounds = array<i64: 1, 8, 384>}]} {
    %c0_i32 = arith.constant 0 : i32
    %0 = arith.cmpi eq, %arg1, %c0_i32 : i32
    %1 = arith.extui %0 : i1 to i32
    %c0_i32_0 = arith.constant 0 : i32
    %2 = arith.cmpi ne, %1, %c0_i32_0 : i32
    scf.if %2 {
      %cst_24 = arith.constant 0.000000e+00 : f32
      %51 = vector.broadcast %cst_24 : f32 to vector<1x8x384xf32>
      %c0_25 = arith.constant 0 : index
      %c0_26 = arith.constant 0 : index
      %c0_27 = arith.constant 0 : index
      %52 = vector.load %arg4[%c0_25, %c0_26, %c0_27] : memref<1x8x384xf32, #tpu.memory_space<vmem>>, vector<1x8x384xf32>
      tpu.vector_store %arg4[%c0_25, %c0_26, %c0_27], %51 {strides = array<i32>} : memref<1x8x384xf32, #tpu.memory_space<vmem>>, vector<1x8x384xf32>,
    } else {
    }
    %cst = arith.constant 0.000000e+00 : f32
    %3 = vector.broadcast %cst : f32 to vector<8x128xf32>
    %c0_i32_1 = arith.constant 0 : i32
    %c256_i32 = arith.constant 256 : i32
    %4 = arith.muli %c0_i32_1, %c256_i32 : i32
    %5 = tpu.assume_multiple %4, 128 : i32
    %c0_i32_2 = arith.constant 0 : i32
    %6 = arith.addi %5, %c0_i32_2 : i32
    %c0 = arith.constant 0 : index
    %7 = arith.index_cast %6 : i32 to index
    %8 = vector.load %arg2[%c0, %7] : memref<8x256xf32, #tpu.memory_space<vmem>>, vector<8x128xf32>
    %c0_3 = arith.constant 0 : index
    %9 = arith.index_cast %6 : i32 to index
    %10 = vector.load %arg3[%c0_3, %9] : memref<8x256xf32, #tpu.memory_space<vmem>>, vector<8x128xf32>
    %cst_4 = arith.constant 5.000000e-01 : f32
    %11 = vector.broadcast %cst_4 : f32 to vector<8x128xf32>
    %12 = arith.mulf %11, %8 : vector<8x128xf32>
    %13 = math.tanh %12 : vector<8x128xf32>
    %14 = arith.mulf %13, %10 : vector<8x128xf32>
    %15 = arith.addf %3, %14 : vector<8x128xf32>
    %16 = arith.addf %3, %13 : vector<8x128xf32>
    %17 = arith.addf %3, %10 : vector<8x128xf32>
    %c128_i32 = arith.constant 128 : i32
    %18 = arith.addi %5, %c128_i32 : i32
    %c0_5 = arith.constant 0 : index
    %19 = arith.index_cast %18 : i32 to index
    %20 = vector.load %arg2[%c0_5, %19] : memref<8x256xf32, #tpu.memory_space<vmem>>, vector<8x128xf32>
    %c0_6 = arith.constant 0 : index
    %21 = arith.index_cast %18 : i32 to index
    %22 = vector.load %arg3[%c0_6, %21] : memref<8x256xf32, #tpu.memory_space<vmem>>, vector<8x128xf32>
    %cst_7 = arith.constant 5.000000e-01 : f32
    %23 = vector.broadcast %cst_7 : f32 to vector<8x128xf32>
    %24 = arith.mulf %23, %20 : vector<8x128xf32>
    %25 = math.tanh %24 : vector<8x128xf32>
    %26 = arith.mulf %25, %22 : vector<8x128xf32>
    %27 = arith.addf %3, %26 : vector<8x128xf32>
    %28 = arith.addf %3, %25 : vector<8x128xf32>
    %29 = arith.addf %3, %22 : vector<8x128xf32>
    %c1_i32 = arith.constant 1 : i32
    %c0_8 = arith.constant 0 : index
    %c0_9 = arith.constant 0 : index
    %c0_10 = arith.constant 0 : index
    %30 = vector.load %arg4[%c0_8, %c0_9, %c0_10] : memref<1x8x384xf32, #tpu.memory_space<vmem>>, vector<1x8x128xf32>
    %31 = vector.shape_cast %30 : vector<1x8x128xf32> to vector<8x128xf32>
    %32 = arith.addf %15, %27 : vector<8x128xf32>
    %33 = arith.addf %31, %32 : vector<8x128xf32>
    %c0_11 = arith.constant 0 : index
    %c0_12 = arith.constant 0 : index
    %c0_13 = arith.constant 0 : index
    %34 = vector.load %arg4[%c0_11, %c0_12, %c0_13] : memref<1x8x384xf32, #tpu.memory_space<vmem>>, vector<1x8x128xf32>
    %35 = vector.shape_cast %34 : vector<1x8x128xf32> to vector<8x128xf32>
    %36 = vector.shape_cast %33 : vector<8x128xf32> to vector<1x8x128xf32>
    tpu.vector_store %arg4[%c0_11, %c0_12, %c0_13], %36 {strides = array<i32>} : memref<1x8x384xf32, #tpu.memory_space<vmem>>, vector<1x8x128xf32>,
    %c0_14 = arith.constant 0 : index
    %c0_15 = arith.constant 0 : index
    %c128 = arith.constant 128 : index
    %37 = vector.load %arg4[%c0_14, %c0_15, %c128] : memref<1x8x384xf32, #tpu.memory_space<vmem>>, vector<1x8x128xf32>
    %38 = vector.shape_cast %37 : vector<1x8x128xf32> to vector<8x128xf32>
    %39 = arith.addf %16, %28 : vector<8x128xf32>
    %40 = arith.addf %38, %39 : vector<8x128xf32>
    %c0_16 = arith.constant 0 : index
    %c0_17 = arith.constant 0 : index
    %c128_18 = arith.constant 128 : index
    %41 = vector.load %arg4[%c0_16, %c0_17, %c128_18] : memref<1x8x384xf32, #tpu.memory_space<vmem>>, vector<1x8x128xf32>
    %42 = vector.shape_cast %41 : vector<1x8x128xf32> to vector<8x128xf32>
    %43 = vector.shape_cast %40 : vector<8x128xf32> to vector<1x8x128xf32>
    tpu.vector_store %arg4[%c0_16, %c0_17, %c128_18], %43 {strides = array<i32>} : memref<1x8x384xf32, #tpu.memory_space<vmem>>, vector<1x8x128xf32>,
    %c0_19 = arith.constant 0 : index
    %c0_20 = arith.constant 0 : index
    %c256 = arith.constant 256 : index
    %44 = vector.load %arg4[%c0_19, %c0_20, %c256] : memref<1x8x384xf32, #tpu.memory_space<vmem>>, vector<1x8x128xf32>
    %45 = vector.shape_cast %44 : vector<1x8x128xf32> to vector<8x128xf32>
    %46 = arith.addf %17, %29 : vector<8x128xf32>
    %47 = arith.addf %45, %46 : vector<8x128xf32>
    %c0_21 = arith.constant 0 : index
    %c0_22 = arith.constant 0 : index
    %c256_23 = arith.constant 256 : index
    %48 = vector.load %arg4[%c0_21, %c0_22, %c256_23] : memref<1x8x384xf32, #tpu.memory_space<vmem>>, vector<1x8x128xf32>
    %49 = vector.shape_cast %48 : vector<1x8x128xf32> to vector<8x128xf32>
    %50 = vector.shape_cast %47 : vector<8x128xf32> to vector<1x8x128xf32>
    tpu.vector_store %arg4[%c0_21, %c0_22, %c256_23], %50 {strides = array<i32>} : memref<1x8x384xf32, #tpu.memory_space<vmem>>, vector<1x8x128xf32>,
    return
  }
  func.func @transform_0(%arg0: i32, %arg1: i32) -> (i32, i32) {
    %c1_i32 = arith.constant 1 : i32
    %0 = arith.muli %arg0, %c1_i32 : i32
    %1 = arith.addi %0, %arg1 : i32
    %c0_i32 = arith.constant 0 : i32
    %c0_i32_0 = arith.constant 0 : i32
    return %c0_i32, %1 : i32, i32
  }
  func.func @transform_1(%arg0: i32, %arg1: i32) -> (i32, i32) {
    %c1_i32 = arith.constant 1 : i32
    %0 = arith.muli %arg0, %c1_i32 : i32
    %1 = arith.addi %0, %arg1 : i32
    %c0_i32 = arith.constant 0 : i32
    %c0_i32_0 = arith.constant 0 : i32
    return %c0_i32, %1 : i32, i32
  }
  func.func @transform_2(%arg0: i32, %arg1: i32) -> (i32, i32, i32) {
    %c0_i32 = arith.constant 0 : i32
    %c0_i32_0 = arith.constant 0 : i32
    %c0_i32_1 = arith.constant 0 : i32
    return %arg0, %c0_i32, %c0_i32_0 : i32, i32, i32
  }
}

</mosaic_0001>

<llo_original>
// kernel: tpu_custom_call.1
$region0: #{tpu_custom_call.1}
  #allocation0 [shape = 'u32[]', space=smem, size = 0x4, offset = 0x4, fixed_abs, tag = 'smem constant byte address 0x4 - core index']
  #allocation1 [shape = 'u32[144,128]{1,0:T(1,128)}', space=vmem, size = 0x12000, scoped, tag = 'internal scratch']
  %s0 = inlined_call_operand.hbm [shape: f32[8,256], index: 0, kind: input, shape index: {}]
  %s1 = inlined_call_operand.hbm [shape: f32[8,256], index: 1, kind: input, shape index: {}]
  %s2 = inlined_call_operand.hbm [shape: f32[1,8,384], index: 2, kind: output, shape index: {}]
  %s3 = sld [smem:[#allocation0]]
  $region30: #{tpu_custom_call.1} parent=0
    _
  %s5 = ssub.s32 1, %s3
  %s6 = scalar_select 0, %s5, %s3
  $region1: #{tpu_custom_call.1} parent=0
    #allocation2 [shape = 'u8[8192]{0}', space=vmem, size = 0x2000, scoped, tag = 'input window, operand 0, single buffered']
    #allocation3 [shape = 's32[1]{0}', space=sflag, size = 0x4, scoped, tag = 'scoped memory for tpu_custom_call.1']
    #allocation4 [shape = 's32[1]{0}', space=sflag, size = 0x4, scoped, tag = 'scoped memory for tpu_custom_call.1']
    #allocation5 [shape = 'u8[8192]{0}', space=vmem, size = 0x2000, scoped, tag = 'input window, operand 1, single buffered']
    #allocation6 [shape = 's32[1]{0}', space=sflag, size = 0x4, scoped, tag = 'scoped memory for tpu_custom_call.1']
    #allocation7 [shape = 'u8[12288]{0}', space=vmem, size = 0x3000, scoped, tag = 'output window, operand 0, single buffered']
    %7 = vsyncpa [#allocation3], 0
    %8 = vsyncpa [#allocation6], 0
    %9 = vsyncpa [#allocation4], 0
    // Predicated region
    $region2: #{tpu_custom_call.1} parent=1 // pred_check
      _
    $region3: #{tpu_custom_call.1} parent=1 // pred_check_branch
      %11 = sbr.rel (0) target = $region5
    $region4: #{tpu_custom_call.1} parent=1 // pred_region
      %s12 = sadd.s32 0, 0
      %s13 = smul.u32 2, %s12
      %s15 = ssub.s32 256, 256
      %16 = vsyncadd [#allocation3], %s15
      %s17 = smul.addr %s13, 128
      %s18 = scalar_lea.hbm %s0, %s17
      %s20 = sshll.u32 [#allocation2], 4
      %s21 = int_to_ptr.vmem [resolvable:$true] %s20
      %23 = dma.hbm_to_vmem [thread:$0]  %s18, 256, %s21, [#allocation3]
    $region5: #{tpu_custom_call.1} parent=1 // pred_fallthru
      _
    // Predicated region
    $region6: #{tpu_custom_call.1} parent=1 // pred_check
      _
    $region7: #{tpu_custom_call.1} parent=1 // pred_check_branch
      %25 = sbr.rel (0) target = $region9
    $region8: #{tpu_custom_call.1} parent=1 // pred_region
      %s26 = sadd.s32 0, 0
      %s27 = smul.u32 2, %s26
      %s29 = ssub.s32 256, 256
      %30 = vsyncadd [#allocation6], %s29
      %s31 = smul.addr %s27, 128
      %s32 = scalar_lea.hbm %s1, %s31
      %s34 = sshll.u32 [#allocation5], 4
      %s35 = int_to_ptr.vmem [resolvable:$true] %s34
      %37 = dma.hbm_to_vmem [thread:$0]  %s32, 256, %s35, [#allocation6]
    $region9: #{tpu_custom_call.1} parent=1 // pred_fallthru
      _
    // Predicated region
    $region10: #{tpu_custom_call.1} parent=1 // pred_check
      _
    $region11: #{tpu_custom_call.1} parent=1 // pred_check_branch
      %39 = sbr.rel (0) target = $region13
    $region12: #{tpu_custom_call.1} parent=1 // pred_region
      %40 = dma.done [#allocation3], 256
    $region13: #{tpu_custom_call.1} parent=1 // pred_fallthru
      _
    // Predicated region
    $region14: #{tpu_custom_call.1} parent=1 // pred_check
      _
    $region15: #{tpu_custom_call.1} parent=1 // pred_check_branch
      %42 = sbr.rel (0) target = $region17
    $region16: #{tpu_custom_call.1} parent=1 // pred_region
      %43 = dma.done [#allocation6], 256
    $region17: #{tpu_custom_call.1} parent=1 // pred_fallthru
      _
    %s44 = sadd.s32 0, 0
    %s45 = smul.u32 2, %s44
    %s46 = sadd.s32 0, 0
    %s47 = smul.u32 2, %s46
    %p48 = scmp.eq.s32.totalorder 0, 0
    // Predicated region
    $region18: #{tpu_custom_call.1} parent=1 // pred_check
      %p49 = pneg %p48
    $region19: #{tpu_custom_call.1} parent=1 // pred_check_branch
      %51 = sbr.rel (%p49) target = $region21
    $region20: #{tpu_custom_call.1} parent=1 // pred_region
      %52 = vst [vmem:[#allocation7] sm:$0xff] 0.0
      %53 = vst [vmem:[#allocation7 + $0x8] sm:$0xff] 0.0
      %54 = vst [vmem:[#allocation7 + $0x10] sm:$0xff] 0.0
    $region21: #{tpu_custom_call.1} parent=1 // pred_fallthru
      _
    %v55 = vld [vmem:[#allocation2] sm:$0xff]
    %v56 = vld [vmem:[#allocation5] sm:$0xff]
    %v57 = vmul.f32 %v55, 0.5
    %v58 = vtanh.pop %v57
    %v59 = vmul.f32 %v58, %v56
    %v60 = vadd.f32 %v59, 0.0
    %v61 = vadd.f32 %v58, 0.0
    %v62 = vadd.f32 %v56, 0.0
    %s63 = sadd.s32 0, 128
    %s64 = sshra.s32 %s63, 7
    %s65 = sand.u32 %s63, 127
    %s66 = smul.addr %s64, 8
    %s67 = scalar_lea.vmem [#allocation2], %s66
    %v68 = vld [vmem:[%s67] sm:$0xff]
    %s69 = smul.addr %s64, 8
    %s70 = scalar_lea.vmem [#allocation5], %s69
    %v71 = vld [vmem:[%s70] sm:$0xff]
    %v72 = vmul.f32 %v68, 0.5
    %v73 = vtanh.pop %v72
    %v74 = vmul.f32 %v73, %v71
    %v75 = vadd.f32 %v74, 0.0
    %v76 = vadd.f32 %v73, 0.0
    %v77 = vadd.f32 %v71, 0.0
    %v78 = vld [vmem:[#allocation7] sm:$0xff]
    %v79 = vadd.f32 %v60, %v75
    %v80 = vadd.f32 %v78, %v79
    %81 = vst [vmem:[#allocation7] sm:$0xff] %v80
    %v82 = vld [vmem:[#allocation7 + $0x8] sm:$0xff]
    %v83 = vadd.f32 %v61, %v76
    %v84 = vadd.f32 %v82, %v83
    %85 = vst [vmem:[#allocation7 + $0x8] sm:$0xff] %v84
    %v86 = vld [vmem:[#allocation7 + $0x10] sm:$0xff]
    %v87 = vadd.f32 %v62, %v77
    %v88 = vadd.f32 %v86, %v87
    %89 = vst [vmem:[#allocation7 + $0x10] sm:$0xff] %v88
    // Predicated region
    $region22: #{tpu_custom_call.1} parent=1 // pred_check
      _
    $region23: #{tpu_custom_call.1} parent=1 // pred_check_branch
      %91 = sbr.rel (0) target = $region25
    $region24: #{tpu_custom_call.1} parent=1 // pred_region
      %s93 = ssub.s32 384, 384
      %94 = vsyncadd [#allocation4], %s93
      %s96 = sshll.u32 [#allocation7], 4
      %s97 = int_to_ptr.vmem [resolvable:$true] %s96
      %99 = dma.vmem_to_hbm [thread:$0]  %s97, 384, %s2, [#allocation4]
    $region25: #{tpu_custom_call.1} parent=1 // pred_fallthru
      _
    // Predicated region
    $region26: #{tpu_custom_call.1} parent=1 // pred_check
      _
    $region27: #{tpu_custom_call.1} parent=1 // pred_check_branch
      %101 = sbr.rel (0) target = $region29
    $region28: #{tpu_custom_call.1} parent=1 // pred_region
      %102 = dma.done [#allocation4], 384
    $region29: #{tpu_custom_call.1} parent=1 // pred_fallthru
      _
    %103 = vsyncpa [#allocation3], 1
    %104 = vsyncpa [#allocation6], 1
    %105 = vsyncpa [#allocation4], 1

</llo_original>
